<compile_context>
chip_gen: v6e
topology: v6e:2x2x1
jax: 0.10.0
libtpu: 0.0.40
codegen_flags: <defaults>
</compile_context>

<pallas_src>
import functools

import jax
import jax.numpy as jnp
from jax.experimental import pallas as pl
from jax.experimental.pallas import tpu as pltpu

IN_FEATURES = 5
OUT_FEATURES = 10
OTHER = 1.0

M_SMALL = 8    # gridless path handles up to 8 rows (one sublane tile)
TM_BIG = 128   # row tile for the gridded (batched) path
K_PAD = 8      # contraction dim: 5 weights + 1 ones-column + 2 zero rows
N_PAD = 128    # output features padded lane-dense


def _linear_relu_kernel(x_ref, w_ref, o_ref):
    # (TM, 8) @ (8, 128) on the MXU; bias+other already folded into the
    # matmul via the ones-column, so only ReLU remains on the VPU.
    acc = jnp.dot(x_ref[...], w_ref[...], preferred_element_type=jnp.float32)
    o_ref[...] = jnp.maximum(acc, 0.0).astype(o_ref.dtype)


def prepare_params(weight, bias, other):
    """One-time parameter preparation (module "init" time).

    weight: (10, 5) f32 in PyTorch (out, in) layout
    bias:   (10,)   f32
    other:  compile-time scalar (as in the original module's __init__)

    Returns the augmented, padded (K_PAD, N_PAD) weight:
      rows [0:5, :10]        = weight.T
      row  [5,   :10]        = bias + other   (picked up by the ones-column)
      everything else        = 0
    """
    w_aug = jnp.zeros((K_PAD, N_PAD), jnp.float32)
    w_aug = w_aug.at[:IN_FEATURES, :OUT_FEATURES].set(weight.T)
    w_aug = w_aug.at[IN_FEATURES, :OUT_FEATURES].set(bias + jnp.float32(other))
    return w_aug


@jax.jit
def linear_add_relu(x, w_aug):
    """x: (M, 5) f32; w_aug: (K_PAD, N_PAD) pre-augmented weight.

    Entire path (pad -> pallas_call -> slice) is one jitted executable.
    """
    M = x.shape[0]

    if M <= M_SMALL:
        m_pad, tm = M_SMALL, M_SMALL
    else:
        tm = TM_BIG
        m_pad = ((M + tm - 1) // tm) * tm

    # Pad x into (m_pad, K_PAD) and append the ones-column that picks up
    # (bias + other) from row IN_FEATURES of w_aug.  Padded rows stay all
    # zero -> ReLU(0) = 0 -> sliced away, so padding is exact.
    x_p = jnp.zeros((m_pad, K_PAD), jnp.float32)
    x_p = x_p.at[:M, :IN_FEATURES].set(x.astype(jnp.float32))
    x_p = x_p.at[:M, IN_FEATURES].set(1.0)

    if m_pad == M_SMALL:
        # Gridless: blocks equal the full (padded) arrays, all in VMEM.
        out_p = pl.pallas_call(
            _linear_relu_kernel,
            out_shape=jax.ShapeDtypeStruct((m_pad, N_PAD), jnp.float32),
            in_specs=[
                pl.BlockSpec(memory_space=pltpu.MemorySpace.VMEM),  # x (8, 8)
                pl.BlockSpec(memory_space=pltpu.MemorySpace.VMEM),  # w (8, 128)
            ],
            out_specs=pl.BlockSpec(memory_space=pltpu.MemorySpace.VMEM),
        )(x_p, w_aug)
    else:
        # Batched: grid over M, weight tile resident across steps, M tiles
        # split across TensorCores on v7x via "parallel" semantics.
        out_p = pl.pallas_call(
            _linear_relu_kernel,
            out_shape=jax.ShapeDtypeStruct((m_pad, N_PAD), jnp.float32),
            grid=(m_pad // tm,),
            in_specs=[
                pl.BlockSpec((tm, K_PAD), lambda i: (i, 0)),
                pl.BlockSpec((K_PAD, N_PAD), lambda i: (0, 0)),
            ],
            out_specs=pl.BlockSpec((tm, N_PAD), lambda i: (i, 0)),
            compiler_params=pltpu.CompilerParams(
                dimension_semantics=("parallel",)),
        )(x_p, w_aug)

    # Slice fuses inside the jit; downstream consumers could also take the
    # padded layout directly.
    return out_p[:M, :OUT_FEATURES]


if __name__ == "__main__":
    key = jax.random.PRNGKey(0)
    kx, kw, kb, kx2 = jax.random.split(key, 4)

    # Deterministic parameter init (mimics nn.Linear's U(-1/sqrt(K), 1/sqrt(K))).
    bound = 1.0 / (IN_FEATURES ** 0.5)
    weight = jax.random.uniform(kw, (OUT_FEATURES, IN_FEATURES),
                                jnp.float32, -bound, bound)
    bias = jax.random.uniform(kb, (OUT_FEATURES,), jnp.float32, -bound, bound)

    # One-time parameter augmentation (equivalent to module init).
    w_aug = jax.block_until_ready(prepare_params(weight, bias, OTHER))

    # Example input matching the module: x1 = torch.randn(1, 5)
    x1 = jax.random.normal(kx, (1, IN_FEATURES), jnp.float32)

    out = jax.block_until_ready(linear_add_relu(x1, w_aug))
    ref = jnp.maximum(x1 @ weight.T + bias + OTHER, 0.0)
    assert out.shape == (1, OUT_FEATURES)
    assert jnp.allclose(out, ref, atol=1e-5, rtol=1e-5)

    # Also exercise the batched (gridded) path with a small batch.
    xb = jax.random.normal(kx2, (16, IN_FEATURES), jnp.float32)
    outb = jax.block_until_ready(linear_add_relu(xb, w_aug))
    refb = jnp.maximum(xb @ weight.T + bias + OTHER, 0.0)
    assert outb.shape == (16, OUT_FEATURES)
    assert jnp.allclose(outb, refb, atol=1e-5, rtol=1e-5)

    print("KERNEL_OK")
</pallas_src>

<mosaic_0001>
module attributes {stable_mosaic.version = 11 : i64} {
  func.func @_linear_relu_kernel(%arg0: memref<8x8xf32, #tpu.memory_space<vmem>>, %arg1: memref<8x128xf32, #tpu.memory_space<vmem>>, %arg2: memref<8x128xf32, #tpu.memory_space<vmem>>) attributes {dimension_semantics = [], scalar_prefetch = 0 : i64, scratch_operands = 0 : i64, tpu.core_type = #tpu.core_type<tc>} {
    %c0 = arith.constant 0 : index
    %c0_0 = arith.constant 0 : index
    %0 = vector.load %arg0[%c0, %c0_0] : memref<8x8xf32, #tpu.memory_space<vmem>>, vector<8x8xf32>
    %c0_1 = arith.constant 0 : index
    %c0_2 = arith.constant 0 : index
    %1 = vector.load %arg1[%c0_1, %c0_2] : memref<8x128xf32, #tpu.memory_space<vmem>>, vector<8x128xf32>
    %cst = arith.constant dense<0.000000e+00> : vector<8x128xf32>
    %2 = tpu.matmul %0, %1, %cst {dimension_numbers = #tpu.dot_dimension_numbers<[1], [0], [0], [1], [0, 0, 1, 1], [], []>} : vector<8x8xf32>, vector<8x128xf32>, vector<8x128xf32> -> vector<8x128xf32>
    %cst_3 = arith.constant 0.000000e+00 : f32
    %3 = vector.broadcast %cst_3 : f32 to vector<8x128xf32>
    %4 = arith.maximumf %2, %3 : vector<8x128xf32>
    %c0_4 = arith.constant 0 : index
    %c0_5 = arith.constant 0 : index
    %5 = vector.load %arg2[%c0_4, %c0_5] : memref<8x128xf32, #tpu.memory_space<vmem>>, vector<8x128xf32>
    tpu.vector_store %arg2[%c0_4, %c0_5], %4 {strides = array<i32>} : memref<8x128xf32, #tpu.memory_space<vmem>>, vector<8x128xf32>,
    return
  }
}

</mosaic_0001>

<llo_original>
// kernel: linear_add_relu.1
$region0: #{linear_add_relu.1}
  #allocation0 [shape = 'u32[]', space=smem, size = 0x4, offset = 0x4, fixed_abs, tag = 'smem constant byte address 0x4 - core index']
  #allocation1 [shape = 'u32[144,128]{1,0:T(1,128)}', space=vmem, size = 0x12000, scoped, tag = 'internal scratch']
  %s0 = inlined_call_operand.vmem [shape: f32[8,8], index: 0, kind: input, shape index: {}]
  %s1 = inlined_call_operand.vmem [shape: f32[8,128], index: 1, kind: input, shape index: {}]
  %s2 = inlined_call_operand.vmem [shape: f32[8,128], index: 2, kind: output, shape index: {}]
  %s3 = sld [smem:[#allocation0]]
  $region18: #{linear_add_relu.1} parent=0
    _
  %s5 = ssub.s32 1, %s3
  %s6 = scalar_select 0, %s5, %s3
  // Predicated region
  $region2: #{linear_add_relu.1} parent=0 // pred_check
    _
  $region3: #{linear_add_relu.1} parent=0 // pred_check_branch
    %8 = sbr.rel (0) target = $region5
  $region4: #{linear_add_relu.1} parent=0 // pred_region
    _
  $region5: #{linear_add_relu.1} parent=0 // pred_fallthru
    _
  // Predicated region
  $region6: #{linear_add_relu.1} parent=0 // pred_check
    _
  $region7: #{linear_add_relu.1} parent=0 // pred_check_branch
    %10 = sbr.rel (0) target = $region9
  $region8: #{linear_add_relu.1} parent=0 // pred_region
    _
  $region9: #{linear_add_relu.1} parent=0 // pred_fallthru
    _
  %v11 = vld [vmem:[%s0] sm:$0xff]
  %v12 = vld [vmem:[%s1] sm:$0xff]
  %vm13 = vcmask 64512
  %v15 = vsel %vm13, %v11, 0
  %17 = vmatprep.subr.mxu0 0.0
  %18 = vmatpush1.msra.mxu0 0.0
  %19 = vmatprep.subr.mxu0 0.0
  %20 = vmatpush1.msra.mxu0 0.0
  %21 = vmatprep.subr.mxu0 0.0
  %22 = vmatpush1.msra.mxu0 0.0
  %23 = vmatprep.subr.mxu0 0.0
  %24 = vmatpush1.msra.mxu0 0.0
  %25 = vmatprep.subr.mxu0 0.0
  %26 = vmatpush1.msra.mxu0 0.0
  %27 = vmatprep.subr.mxu0 0.0
  %28 = vmatpush1.msra.mxu0 0.0
  %29 = vmatprep.subr.mxu0 0.0
  %30 = vmatpush1.msra.mxu0 0.0
  %31 = vmatprep.subr.mxu0 0.0
  %32 = vmatpush1.msra.mxu0 0.0
  %33 = vmatprep.subr.mxu0 0.0
  %34 = vmatpush1.msra.mxu0 0.0
  %35 = vmatprep.subr.mxu0 0.0
  %36 = vmatpush1.msra.mxu0 0.0
  %37 = vmatprep.subr.mxu0 0.0
  %38 = vmatpush1.msra.mxu0 0.0
  %39 = vmatprep.subr.mxu0 0.0
  %40 = vmatpush1.msra.mxu0 0.0
  %41 = vmatprep.subr.mxu0 0.0
  %42 = vmatpush1.msra.mxu0 0.0
  %43 = vmatprep.subr.mxu0 0.0
  %44 = vmatpush1.msra.mxu0 0.0
  %45 = vmatprep.subr.mxu0 0.0
  %46 = vmatpush1.msra.mxu0 0.0
  %47 = vmatprep.subr.mxu0 0.0
  %48 = vmatpush1.msra.mxu0 %v12
  %49 = vmatprep.subr.mxu0 0.0
  %50 = vmatpush2.msra.mxu0 0.0
  %51 = vmatprep.subr.mxu0 0.0
  %52 = vmatpush2.msra.mxu0 0.0
  %53 = vmatprep.subr.mxu0 0.0
  %54 = vmatpush2.msra.mxu0 0.0
  %55 = vmatprep.subr.mxu0 0.0
  %56 = vmatpush2.msra.mxu0 0.0
  %57 = vmatprep.subr.mxu0 0.0
  %58 = vmatpush2.msra.mxu0 0.0
  %59 = vmatprep.subr.mxu0 0.0
  %60 = vmatpush2.msra.mxu0 0.0
  %61 = vmatprep.subr.mxu0 0.0
  %62 = vmatpush2.msra.mxu0 0.0
  %63 = vmatprep.subr.mxu0 0.0
  %64 = vmatpush2.msra.mxu0 0.0
  %65 = vmatprep.subr.mxu0 0.0
  %66 = vmatpush2.msra.mxu0 0.0
  %67 = vmatprep.subr.mxu0 0.0
  %68 = vmatpush2.msra.mxu0 0.0
  %69 = vmatprep.subr.mxu0 0.0
  %70 = vmatpush2.msra.mxu0 0.0
  %71 = vmatprep.subr.mxu0 0.0
  %72 = vmatpush2.msra.mxu0 0.0
  %73 = vmatprep.subr.mxu0 0.0
  %74 = vmatpush2.msra.mxu0 0.0
  %75 = vmatprep.subr.mxu0 0.0
  %76 = vmatpush2.msra.mxu0 0.0
  %77 = vmatprep.subr.mxu0 0.0
  %78 = vmatpush2.msra.mxu0 0.0
  %79 = vmatprep.subr.mxu0 0.0
  %80 = vmatpush2.msra.mxu0 0.0
  %81 = vmatprep.mubr.f32.mxu0 0.0
  %82 = vmatmul.mubr.f32.gmra.mxu0 %v15
  %v83 = vpop.f32.mrf.mxu0
  %v84 = vadd.f32 0.0, %v83
  %v85 = vpop.f32.mrf.mxu0
  %86 = vdwg.mxu0
  %v87 = vmax.f32 %v84, 0.0
  %88 = vst [vmem:[%s2] sm:$0xff] %v87
  // Predicated region
  $region10: #{linear_add_relu.1} parent=0 // pred_check
    _
  $region11: #{linear_add_relu.1} parent=0 // pred_check_branch
    %90 = sbr.rel (0) target = $region13
  $region12: #{linear_add_relu.1} parent=0 // pred_region
    _
  $region13: #{linear_add_relu.1} parent=0 // pred_fallthru
    _
  // Predicated region
  $region14: #{linear_add_relu.1} parent=0 // pred_check
    _
  $region15: #{linear_add_relu.1} parent=0 // pred_check_branch
    %92 = sbr.rel (0) target = $region17
  $region16: #{linear_add_relu.1} parent=0 // pred_region
    _
  $region17: #{linear_add_relu.1} parent=0 // pred_fallthru
    _

</llo_original>
